<compile_context>
chip_gen: v5e
topology: v5e:2x2
jax: 0.10.0
libtpu: 0.0.40
codegen_flags: <defaults>
</compile_context>

<pallas_src>
import functools

import jax
import jax.numpy as jnp
from jax.experimental import pallas as pl
from jax.experimental.pallas import tpu as pltpu


def _cdiv(a, b):
    return -(-a // b)


def _round_up(x, m):
    return _cdiv(x, m) * m


def _tpu_config():
    """Per-generation tile budget / VMEM limit / minimum batch-tile count."""
    kind = ""
    try:
        kind = getattr(jax.devices()[0], "device_kind", "").lower()
    except Exception:
        pass
    if "v7" in kind:    # 64 MiB physical VMEM, 2 TCs/chip
        return {"tile_budget": 14 << 20, "vmem_limit": 48 << 20, "min_batch_tiles": 2}
    if "v6" in kind:    # 128 MiB VMEM
        return {"tile_budget": 24 << 20, "vmem_limit": 100 << 20, "min_batch_tiles": 1}
    if "v5" in kind:    # 128 MiB VMEM (scoped default is small -> explicit limit mandatory)
        return {"tile_budget": 20 << 20, "vmem_limit": 96 << 20, "min_batch_tiles": 1}
    return {"tile_budget": 12 << 20, "vmem_limit": 48 << 20, "min_batch_tiles": 1}


def _cls_head_kernel(x_ref, w_ref, b_ref, sm_ref, lsm_ref, h_acc,
                     *, seq_len, last_tile_start, mask_last):
    # x_ref : (TB, TS, D) streamed tile of the encoder output (input dtype)
    # w_ref : (D, Lp)     resident fc weight (input dtype, zero-padded columns)
    # b_ref : (1, Lp)     resident fc bias   (f32, -inf in padded columns)
    # sm_ref/lsm_ref : (TB, Lp) f32 outputs, written on the last seq step only
    # h_acc : (TB, D)     running max accumulator in the input dtype
    k = pl.program_id(1)
    last = pl.num_programs(1) - 1

    @pl.when(k == 0)
    def _init():
        h_acc[...] = jnp.full_like(h_acc, -jnp.inf)

    def _update(x_tile):
        # Streaming max over the sequence axis, in the input dtype (exact for max).
        h_acc[...] = jnp.maximum(h_acc[...], jnp.max(x_tile, axis=1))

    if mask_last:
        # Full tiles: plain max (no mask cost on the hot path).
        @pl.when(k != last)
        def _full():
            _update(x_ref[...])

        # Ragged last tile: mask positions >= S with the dtype's most-negative value.
        @pl.when(k == last)
        def _ragged():
            pos = last_tile_start + jax.lax.broadcasted_iota(jnp.int32, x_ref.shape, 1)
            neg = jnp.finfo(x_ref.dtype).min
            _update(jnp.where(pos < seq_len, x_ref[...], neg))
    else:
        _update(x_ref[...])

    @pl.when(k == last)
    def _finalize():
        h = h_acc[...]                                             # (TB, D), input dtype
        logits = jnp.dot(h, w_ref[...],
                         preferred_element_type=jnp.float32)       # (TB, Lp) on MXU, f32 acc
        logits = logits + b_ref[...]                               # padded cols -> -inf

        # Numerically stable log-softmax over the label axis; softmax = exp(lsm)
        # (log-domain form: no divide needed, exp/log ride the EUP slot).
        m = jnp.max(logits, axis=1, keepdims=True)                 # finite (>=1 real label)
        z = logits - m
        s = jnp.sum(jnp.exp(z), axis=1, keepdims=True)             # padded cols add 0
        lsm = z - jnp.log(s)
        lsm_ref[...] = lsm.astype(lsm_ref.dtype)
        sm_ref[...] = jnp.exp(lsm).astype(sm_ref.dtype)


def classification_wrapper_forward(x, lens, w, b, *,
                                   tile_budget_bytes=None, vmem_limit_bytes=None):
    """x: (B, S, D) encoder output; lens is unused (matches torch forward);
    w: (D, L) (== torch W.T); b: (L,). Returns (softmax, log_softmax), each (B, L)."""
    del lens  # unused by the torch module's forward

    B, S, D = x.shape
    Din, L = w.shape
    assert Din == D, "fc weight feature dim must match encoder dim"

    cfg = _tpu_config()
    tile_budget = tile_budget_bytes or cfg["tile_budget"]
    vmem_limit = vmem_limit_bytes or cfg["vmem_limit"]

    itemsize = jnp.dtype(x.dtype).itemsize
    sub = {4: 8, 2: 16, 1: 32}.get(itemsize, 8)   # sublane multiple for the input dtype

    # Balanced batch tile: <= 128 rows, multiple of 8 (f32 output sublane), minimal
    # over-padding (B=130 -> TB=72 / 2 tiles, not 128 -> 256 padded rows).
    TB = _round_up(_cdiv(B, _cdiv(B, 128)), 8)
    # v7x: make sure the "parallel" batch axis has >= 2 tiles so both TCs get work.
    if cfg["min_batch_tiles"] > 1 and _cdiv(B, TB) < cfg["min_batch_tiles"] and B > 8:
        TB = max(8, _round_up(_cdiv(B, cfg["min_batch_tiles"]), 8))
    nb = _cdiv(B, TB)

    # Balanced seq tile: as large as the per-buffer budget allows (Pallas double-buffers
    # the streamed x tile), multiple of `sub`, balanced so the last tile isn't tiny.
    ts_cap = max(sub, (tile_budget // max(1, TB * D * itemsize)) // sub * sub)
    ns = _cdiv(S, ts_cap)
    TS = min(_round_up(_cdiv(S, ns), sub), _round_up(S, sub))
    ns = _cdiv(S, TS)

    Lp = _round_up(L, 128)                        # lane-dense label axis

    # Pad only the tiny fc params (x itself is NOT padded): zero weight columns, -inf
    # bias so padded logits contribute exp(-inf) = 0 to the softmax denominator.
    wp = jnp.pad(w.astype(x.dtype), ((0, 0), (0, Lp - L)))
    bp = jnp.pad(b.astype(jnp.float32).reshape(1, L), ((0, 0), (0, Lp - L)),
                 constant_values=-jnp.inf)

    mask_last = (S % TS) != 0
    kernel = functools.partial(_cls_head_kernel,
                               seq_len=S,
                               last_tile_start=(ns - 1) * TS,
                               mask_last=mask_last)

    sm, lsm = pl.pallas_call(
        kernel,
        out_shape=(
            jax.ShapeDtypeStruct((nb * TB, Lp), jnp.float32),
            jax.ShapeDtypeStruct((nb * TB, Lp), jnp.float32),
        ),
        grid_spec=pltpu.PrefetchScalarGridSpec(
            num_scalar_prefetch=0,
            grid=(nb, ns),
            in_specs=[
                pl.BlockSpec((TB, TS, D), lambda i, k: (i, k, 0)),   # streamed x tile
                pl.BlockSpec((D, Lp), lambda i, k: (0, 0)),          # resident W
                pl.BlockSpec((1, Lp), lambda i, k: (0, 0)),          # resident bias
            ],
            out_specs=[
                pl.BlockSpec((TB, Lp), lambda i, k: (i, 0)),
                pl.BlockSpec((TB, Lp), lambda i, k: (i, 0)),
            ],
            scratch_shapes=[pltpu.VMEM((TB, D), x.dtype)],           # running max
        ),
        compiler_params=pltpu.CompilerParams(
            dimension_semantics=("parallel", "arbitrary"),
            vmem_limit_bytes=vmem_limit,
        ),
    )(x, wp, bp)

    # Slice back to the real batch rows / real labels (drops padded columns/rows).
    return sm[:B, :L], lsm[:B, :L]


if __name__ == "__main__":
    # Small, deterministic example shapes.
    B, S, D, L = 2, 8, 32, 10  # batch, seq, encoder.dim, num_labels

    key = jax.random.PRNGKey(0)
    kx, kw, kb, kl = jax.random.split(key, 4)

    # x plays the role of the encoder's output (identity encoder stand-in).
    x = jax.random.normal(kx, (B, S, D), dtype=jnp.float32)
    lens = jax.random.randint(kl, (B,), 1, S + 1)  # unused, mirrors torch signature

    # nn.Linear(D, L) params, initialized deterministically (uniform +/- 1/sqrt(D)).
    bound = 1.0 / jnp.sqrt(jnp.float32(D))
    w = jax.random.uniform(kw, (D, L), jnp.float32, -bound, bound)   # (D, L) == torch W.T
    b = jax.random.uniform(kb, (L,), jnp.float32, -bound, bound)

    sm, lsm = classification_wrapper_forward(x, lens, w, b)
    jax.block_until_ready((sm, lsm))

    # Reference check in plain JAX.
    h_ref = jnp.max(x, axis=1)
    logits_ref = h_ref @ w + b
    sm_ref = jax.nn.softmax(logits_ref, axis=1)
    lsm_ref = jax.nn.log_softmax(logits_ref, axis=1)
    assert sm.shape == (B, L) and lsm.shape == (B, L)
    assert jnp.allclose(sm, sm_ref, atol=1e-5, rtol=1e-5), "softmax mismatch"
    assert jnp.allclose(lsm, lsm_ref, atol=1e-5, rtol=1e-5), "log_softmax mismatch"
    assert bool(jnp.all(jnp.isfinite(sm))) and bool(jnp.all(jnp.isfinite(lsm)))

    # Second check with ragged tiles (forces the in-kernel seq mask + ragged batch tile).
    B2, S2 = 3, 13
    x2 = jax.random.normal(kx, (B2, S2, D), dtype=jnp.float32)
    sm2, lsm2 = classification_wrapper_forward(x2, None, w, b, tile_budget_bytes=8 * D * 4)
    jax.block_until_ready((sm2, lsm2))
    logits2 = jnp.max(x2, axis=1) @ w + b
    assert jnp.allclose(sm2, jax.nn.softmax(logits2, axis=1), atol=1e-5, rtol=1e-5)
    assert jnp.allclose(lsm2, jax.nn.log_softmax(logits2, axis=1), atol=1e-5, rtol=1e-5)

    print("KERNEL_OK")
</pallas_src>

<mosaic_0001>
module attributes {stable_mosaic.version = 11 : i64} {
  func.func @_cls_head_kernel(%arg0: i32, %arg1: i32, %arg2: memref<8x8x32xf32, #tpu.memory_space<vmem>>, %arg3: memref<32x128xf32, #tpu.memory_space<vmem>>, %arg4: memref<1x128xf32, #tpu.memory_space<vmem>>, %arg5: memref<8x128xf32, #tpu.memory_space<vmem>>, %arg6: memref<8x128xf32, #tpu.memory_space<vmem>>, %arg7: memref<8x32xf32, #tpu.memory_space<vmem>>) attributes {dimension_semantics = [#tpu.dimension_semantics<parallel>, #tpu.dimension_semantics<arbitrary>], iteration_bounds = array<i64: 1, 1>, scalar_prefetch = 0 : i64, scratch_operands = 1 : i64, tpu.core_type = #tpu.core_type<tc>, window_params = [{transform_indices = @transform_0, window_bounds = array<i64: 8, 8, 32>}, {pipeline_mode = #tpu.pipeline_mode<synchronous>, transform_indices = @transform_1, window_bounds = array<i64: 32, 128>}, {pipeline_mode = #tpu.pipeline_mode<synchronous>, transform_indices = @transform_2, window_bounds = array<i64: 1, 128>}, {transform_indices = @transform_3, window_bounds = array<i64: 8, 128>}, {transform_indices = @transform_4, window_bounds = array<i64: 8, 128>}]} {
    %c0_i32 = arith.constant 0 : i32
    %0 = arith.cmpi eq, %arg1, %c0_i32 : i32
    %1 = arith.extui %0 : i1 to i32
    %c0_i32_0 = arith.constant 0 : i32
    %2 = arith.cmpi ne, %1, %c0_i32_0 : i32
    scf.if %2 {
      %cst_9 = arith.constant 0xFF800000 : f32
      %11 = vector.broadcast %cst_9 : f32 to vector<8x32xf32>
      %c0_10 = arith.constant 0 : index
      %c0_11 = arith.constant 0 : index
      %12 = vector.load %arg7[%c0_10, %c0_11] : memref<8x32xf32, #tpu.memory_space<vmem>>, vector<8x32xf32>
      tpu.vector_store %arg7[%c0_10, %c0_11], %11 {strides = array<i32>} : memref<8x32xf32, #tpu.memory_space<vmem>>, vector<8x32xf32>,
    } else {
    }
    %c0 = arith.constant 0 : index
    %c0_1 = arith.constant 0 : index
    %c0_2 = arith.constant 0 : index
    %3 = vector.load %arg2[%c0, %c0_1, %c0_2] : memref<8x8x32xf32, #tpu.memory_space<vmem>>, vector<8x8x32xf32>
    %c0_3 = arith.constant 0 : index
    %c0_4 = arith.constant 0 : index
    %4 = vector.load %arg7[%c0_3, %c0_4] : memref<8x32xf32, #tpu.memory_space<vmem>>, vector<8x32xf32>
    %cst = arith.constant dense<0xFF800000> : vector<8x32xf32>
    %5 = vector.multi_reduction <maximumf>, %3, %cst [1] : vector<8x8x32xf32> to vector<8x32xf32>
    %6 = arith.maximumf %4, %5 : vector<8x32xf32>
    %c0_5 = arith.constant 0 : index
    %c0_6 = arith.constant 0 : index
    %7 = vector.load %arg7[%c0_5, %c0_6] : memref<8x32xf32, #tpu.memory_space<vmem>>, vector<8x32xf32>
    tpu.vector_store %arg7[%c0_5, %c0_6], %6 {strides = array<i32>} : memref<8x32xf32, #tpu.memory_space<vmem>>, vector<8x32xf32>,
    %c0_i32_7 = arith.constant 0 : i32
    %8 = arith.cmpi eq, %arg1, %c0_i32_7 : i32
    %9 = arith.extui %8 : i1 to i32
    %c0_i32_8 = arith.constant 0 : i32
    %10 = arith.cmpi ne, %9, %c0_i32_8 : i32
    scf.if %10 {
      %c0_9 = arith.constant 0 : index
      %c0_10 = arith.constant 0 : index
      %11 = vector.load %arg7[%c0_9, %c0_10] : memref<8x32xf32, #tpu.memory_space<vmem>>, vector<8x32xf32>
      %c0_11 = arith.constant 0 : index
      %c0_12 = arith.constant 0 : index
      %12 = vector.load %arg3[%c0_11, %c0_12] : memref<32x128xf32, #tpu.memory_space<vmem>>, vector<32x128xf32>
      %cst_13 = arith.constant dense<0.000000e+00> : vector<8x128xf32>
      %13 = tpu.matmul %11, %12, %cst_13 {dimension_numbers = #tpu.dot_dimension_numbers<[1], [0], [0], [1], [0, 0, 1, 1], [], []>} : vector<8x32xf32>, vector<32x128xf32>, vector<8x128xf32> -> vector<8x128xf32>
      %c0_14 = arith.constant 0 : index
      %c0_15 = arith.constant 0 : index
      %14 = vector.load %arg4[%c0_14, %c0_15] : memref<1x128xf32, #tpu.memory_space<vmem>>, vector<1x128xf32>
      %15 = vector.broadcast %14 : vector<1x128xf32> to vector<8x128xf32>
      %16 = arith.addf %13, %15 : vector<8x128xf32>
      %cst_16 = arith.constant dense<0xFF800000> : vector<8xf32>
      %17 = vector.multi_reduction <maximumf>, %16, %cst_16 [1] : vector<8x128xf32> to vector<8xf32>
      %18 = vector.shape_cast %17 : vector<8xf32> to vector<8x1xf32>
      %19 = vector.broadcast %18 : vector<8x1xf32> to vector<8x128xf32>
      %20 = arith.subf %16, %19 : vector<8x128xf32>
      %21 = math.exp %20 : vector<8x128xf32>
      %cst_17 = arith.constant dense<0.000000e+00> : vector<8xf32>
      %22 = vector.multi_reduction <add>, %21, %cst_17 [1] : vector<8x128xf32> to vector<8xf32>
      %23 = vector.shape_cast %22 : vector<8xf32> to vector<8x1xf32>
      %24 = math.log %23 : vector<8x1xf32>
      %25 = vector.broadcast %24 : vector<8x1xf32> to vector<8x128xf32>
      %26 = arith.subf %20, %25 : vector<8x128xf32>
      %c0_18 = arith.constant 0 : index
      %c0_19 = arith.constant 0 : index
      %27 = vector.load %arg6[%c0_18, %c0_19] : memref<8x128xf32, #tpu.memory_space<vmem>>, vector<8x128xf32>
      tpu.vector_store %arg6[%c0_18, %c0_19], %26 {strides = array<i32>} : memref<8x128xf32, #tpu.memory_space<vmem>>, vector<8x128xf32>,
      %28 = math.exp %26 : vector<8x128xf32>
      %c0_20 = arith.constant 0 : index
      %c0_21 = arith.constant 0 : index
      %29 = vector.load %arg5[%c0_20, %c0_21] : memref<8x128xf32, #tpu.memory_space<vmem>>, vector<8x128xf32>
      tpu.vector_store %arg5[%c0_20, %c0_21], %28 {strides = array<i32>} : memref<8x128xf32, #tpu.memory_space<vmem>>, vector<8x128xf32>,
    } else {
    }
    return
  }
  func.func @transform_0(%arg0: i32, %arg1: i32) -> (i32, i32, i32) {
    %c0_i32 = arith.constant 0 : i32
    %c0_i32_0 = arith.constant 0 : i32
    return %arg0, %arg1, %c0_i32 : i32, i32, i32
  }
  func.func @transform_1(%arg0: i32, %arg1: i32) -> (i32, i32) {
    %c0_i32 = arith.constant 0 : i32
    %c0_i32_0 = arith.constant 0 : i32
    %c0_i32_1 = arith.constant 0 : i32
    return %c0_i32, %c0_i32_0 : i32, i32
  }
  func.func @transform_2(%arg0: i32, %arg1: i32) -> (i32, i32) {
    %c0_i32 = arith.constant 0 : i32
    %c0_i32_0 = arith.constant 0 : i32
    %c0_i32_1 = arith.constant 0 : i32
    return %c0_i32, %c0_i32_0 : i32, i32
  }
  func.func @transform_3(%arg0: i32, %arg1: i32) -> (i32, i32) {
    %c0_i32 = arith.constant 0 : i32
    %c0_i32_0 = arith.constant 0 : i32
    return %arg0, %c0_i32 : i32, i32
  }
  func.func @transform_4(%arg0: i32, %arg1: i32) -> (i32, i32) {
    %c0_i32 = arith.constant 0 : i32
    %c0_i32_0 = arith.constant 0 : i32
    return %arg0, %c0_i32 : i32, i32
  }
}

</mosaic_0001>

<llo_original>
// kernel: tpu_custom_call.1
$region0: #{tpu_custom_call.1}
  #allocation0 [shape = 'u32[]', space=smem, size = 0x4, offset = 0x4, fixed_abs, tag = 'smem constant byte address 0x4 - core index']
  #allocation1 [shape = 'u32[72,128]{1,0:T(1,128)}', space=vmem, size = 0x9000, scoped, tag = 'internal scratch']
  #allocation2 [shape = 'f32[8,32]{1,0:T(8,128)}', space=vmem, size = 0x1000, scoped, tag = 'scratch operand']
  %s0 = inlined_call_operand.hbm [shape: f32[2,8,32], index: 0, kind: input, shape index: {}]
  %s1 = inlined_call_operand.hbm [shape: f32[32,128], index: 1, kind: input, shape index: {}]
  %s2 = inlined_call_operand.vmem [shape: f32[1,128], index: 2, kind: input, shape index: {}]
  %s3 = inlined_call_operand.hbm [shape: f32[8,128], index: 3, kind: output, shape index: {0}]
  %s4 = inlined_call_operand.hbm [shape: f32[8,128], index: 4, kind: output, shape index: {1}]
  %5 = xla_tuple %s3, %s4
  %s6 = sld [smem:[#allocation0]]
  $region46: #{tpu_custom_call.1} parent=0
    _
  %s8 = ssub.s32 1, %s6
  %s9 = scalar_select 0, %s8, %s6
  $region1: #{tpu_custom_call.1} parent=0
    #allocation3 [shape = 'u8[32768]{0}', space=vmem, size = 0x8000, scoped, tag = 'input window, operand 0, single buffered']
    #allocation4 [shape = 's32[1]{0}', space=sflag, size = 0x4, scoped, tag = 'scoped memory for tpu_custom_call.1']
    #allocation5 [shape = 's32[1]{0}', space=sflag, size = 0x4, scoped, tag = 'scoped memory for tpu_custom_call.1']
    #allocation6 [shape = 'u8[16384]{0}', space=vmem, size = 0x4000, scoped, tag = 'input window, operand 1, single buffered']
    #allocation7 [shape = 's32[1]{0}', space=sflag, size = 0x4, scoped, tag = 'scoped memory for tpu_custom_call.1']
    #allocation8 [shape = 'u8[4096]{0}', space=vmem, size = 0x1000, scoped, tag = 'output window, operand 0, single buffered']
    #allocation9 [shape = 'u8[4096]{0}', space=vmem, size = 0x1000, scoped, tag = 'output window, operand 1, single buffered']
    #allocation10 [shape = 's32[1]{0}', space=sflag, size = 0x4, scoped, tag = 'scoped memory for tpu_custom_call.1']
    %10 = vsyncpa [#allocation4], 0
    %11 = vsyncpa [#allocation7], 0
    %12 = vsyncpa [#allocation5], 0
    %13 = vsyncpa [#allocation10], 0
    // Predicated region
    $region2: #{tpu_custom_call.1} parent=1 // pred_check
      _
    $region3: #{tpu_custom_call.1} parent=1 // pred_check_branch
      %15 = sbr.rel (0) target = $region5
    $region4: #{tpu_custom_call.1} parent=1 // pred_region
      %17 = vsyncadd [#allocation4], 768
      %s18 = sshll.u32 %s0, 4
      %s19 = int_to_ptr.hbm [resolvable:$true] %s18
      %s20 = sshll.u32 [#allocation3], 4
      %s21 = int_to_ptr.vmem [resolvable:$true] %s20
      %26 = dma.hbm_to_vmem [thread:$0]  %s19, 256, %s21, [#allocation4], 128, 128, 8
    $region5: #{tpu_custom_call.1} parent=1 // pred_fallthru
      _
    // Predicated region
    $region6: #{tpu_custom_call.1} parent=1 // pred_check
      _
    $region7: #{tpu_custom_call.1} parent=1 // pred_check_branch
      %28 = sbr.rel (0) target = $region9
    $region8: #{tpu_custom_call.1} parent=1 // pred_region
      %30 = vsyncadd [#allocation7], 0
      %s31 = sshll.u32 %s1, 4
      %s32 = int_to_ptr.hbm [resolvable:$true] %s31
      %s33 = sshll.u32 [#allocation6], 4
      %s34 = int_to_ptr.vmem [resolvable:$true] %s33
      %39 = dma.hbm_to_vmem [thread:$0]  %s32, 512, %s34, [#allocation7], 128, 128, 8
    $region9: #{tpu_custom_call.1} parent=1 // pred_fallthru
      _
    // Predicated region
    $region10: #{tpu_custom_call.1} parent=1 // pred_check
      _
    $region11: #{tpu_custom_call.1} parent=1 // pred_check_branch
      %41 = sbr.rel (0) target = $region13
    $region12: #{tpu_custom_call.1} parent=1 // pred_region
      _
    $region13: #{tpu_custom_call.1} parent=1 // pred_fallthru
      _
    // Predicated region
    $region14: #{tpu_custom_call.1} parent=1 // pred_check
      _
    $region15: #{tpu_custom_call.1} parent=1 // pred_check_branch
      %43 = sbr.rel (0) target = $region17
    $region16: #{tpu_custom_call.1} parent=1 // pred_region
      %45 = dma.done [#allocation4], 1024
    $region17: #{tpu_custom_call.1} parent=1 // pred_fallthru
      _
    // Predicated region
    $region18: #{tpu_custom_call.1} parent=1 // pred_check
      _
    $region19: #{tpu_custom_call.1} parent=1 // pred_check_branch
      %47 = sbr.rel (0) target = $region21
    $region20: #{tpu_custom_call.1} parent=1 // pred_region
      %49 = dma.done [#allocation7], 512
    $region21: #{tpu_custom_call.1} parent=1 // pred_fallthru
      _
    %p50 = scmp.eq.s32.totalorder 0, 0
    // Predicated region
    $region22: #{tpu_custom_call.1} parent=1 // pred_check
      %p51 = pneg %p50
    $region23: #{tpu_custom_call.1} parent=1 // pred_check_branch
      %53 = sbr.rel (%p51) target = $region25
    $region24: #{tpu_custom_call.1} parent=1 // pred_region
      %vm54 = vcmask 261120
      %55 = vst.msk [vmem:[#allocation2] sm:$0xff] %vm54, -inf
    $region25: #{tpu_custom_call.1} parent=1 // pred_fallthru
      _
    %v56 = vld [vmem:[#allocation3] sm:$0xff]
    %v57 = vld [vmem:[#allocation3 + $0x8] sm:$0xff]
    %v58 = vld [vmem:[#allocation3 + $0x10] sm:$0xff]
    %v59 = vld [vmem:[#allocation3 + $0x18] sm:$0xff]
    %v60 = vld [vmem:[#allocation3 + $0x20] sm:$0xff]
    %v61 = vld [vmem:[#allocation3 + $0x28] sm:$0xff]
    %v62 = vld [vmem:[#allocation3 + $0x30] sm:$0xff]
    %v63 = vld [vmem:[#allocation3 + $0x38] sm:$0xff]
    %v64 = vld [vmem:[#allocation2] sm:$0xff]
    %vm65 = vcmask 261120
    %v66 = vsel %vm65, %v56, -inf
    %v67 = vrot.slane %v66, 4
    %v68 = vmax.f32 %v66, %v67
    %v69 = vrot.slane %v68, 2
    %v70 = vmax.f32 %v68, %v69
    %v71 = vrot.slane %v70, 1
    %v72 = vmax.f32 %v70, %v71
    %v73 = vsel %vm65, %v57, -inf
    %v74 = vrot.slane %v73, 4
    %v75 = vmax.f32 %v73, %v74
    %v76 = vrot.slane %v75, 2
    %v77 = vmax.f32 %v75, %v76
    %v78 = vrot.slane %v77, 1
    %v79 = vmax.f32 %v77, %v78
    %v80 = vsel %vm65, %v58, -inf
    %v81 = vrot.slane %v80, 4
    %v82 = vmax.f32 %v80, %v81
    %v83 = vrot.slane %v82, 2
    %v84 = vmax.f32 %v82, %v83
    %v85 = vrot.slane %v84, 1
    %v86 = vmax.f32 %v84, %v85
    %v87 = vsel %vm65, %v59, -inf
    %v88 = vrot.slane %v87, 4
    %v89 = vmax.f32 %v87, %v88
    %v90 = vrot.slane %v89, 2
    %v91 = vmax.f32 %v89, %v90
    %v92 = vrot.slane %v91, 1
    %v93 = vmax.f32 %v91, %v92
    %v94 = vsel %vm65, %v60, -inf
    %v95 = vrot.slane %v94, 4
    %v96 = vmax.f32 %v94, %v95
    %v97 = vrot.slane %v96, 2
    %v98 = vmax.f32 %v96, %v97
    %v99 = vrot.slane %v98, 1
    %v100 = vmax.f32 %v98, %v99
    %v101 = vsel %vm65, %v61, -inf
    %v102 = vrot.slane %v101, 4
    %v103 = vmax.f32 %v101, %v102
    %v104 = vrot.slane %v103, 2
    %v105 = vmax.f32 %v103, %v104
    %v106 = vrot.slane %v105, 1
    %v107 = vmax.f32 %v105, %v106
    %v108 = vsel %vm65, %v62, -inf
    %v109 = vrot.slane %v108, 4
    %v110 = vmax.f32 %v108, %v109
    %v111 = vrot.slane %v110, 2
    %v112 = vmax.f32 %v110, %v111
    %v113 = vrot.slane %v112, 1
    %v114 = vmax.f32 %v112, %v113
    %v115 = vsel %vm65, %v63, -inf
    %v116 = vrot.slane %v115, 4
    %v117 = vmax.f32 %v115, %v116
    %v118 = vrot.slane %v117, 2
    %v119 = vmax.f32 %v117, %v118
    %v120 = vrot.slane %v119, 1
    %v121 = vmax.f32 %v119, %v120
    %vm130 = vcmask 1041409
    %v131 = vsel %vm130, %v79, %v72
    %vm132 = vcmask 1042434
    %v133 = vsel %vm132, %v86, %v131
    %vm134 = vcmask 1043459
    %v135 = vsel %vm134, %v93, %v133
    %vm136 = vcmask 1044484
    %v137 = vsel %vm136, %v100, %v135
    %vm138 = vcmask 1045509
    %v139 = vsel %vm138, %v107, %v137
    %vm140 = vcmask 1046534
    %v141 = vsel %vm140, %v114, %v139
    %vm142 = vcmask 1047559
    %v143 = vsel %vm142, %v121, %v141
    %v145 = vmax.f32 %v64, %v143
    %146 = vst.msk [vmem:[#allocation2] sm:$0xff] %vm65, %v145
    // Predicated region
    $region26: #{tpu_custom_call.1} parent=1 // pred_check
      %p147 = pneg %p50
    $region27: #{tpu_custom_call.1} parent=1 // pred_check_branch
      %149 = sbr.rel (%p147) target = $region29
    $region28: #{tpu_custom_call.1} parent=1 // pred_region
      %v150 = vld [vmem:[#allocation2] sm:$0xff]
      %v151 = vld [vmem:[#allocation6] sm:$0xff]
      %v152 = vld [vmem:[#allocation6 + $0x8] sm:$0xff]
      %v153 = vld [vmem:[#allocation6 + $0x10] sm:$0xff]
      %v154 = vld [vmem:[#allocation6 + $0x18] sm:$0xff]
      %v155 = vld [vmem:[%s2] sm:$0x1]
      %v157 = vperm.slane %v155, 0
      %v160 = vsel %vm65, %v150, 0
      %162 = vmatpush.msra.mxu0 0.0
      %163 = vmatpush.msra.mxu0 0.0
      %164 = vmatpush.msra.mxu0 0.0
      %165 = vmatpush.msra.mxu0 0.0
      %166 = vmatpush.msra.mxu0 0.0
      %167 = vmatpush.msra.mxu0 0.0
      %168 = vmatpush.msra.mxu0 0.0
      %169 = vmatpush.msra.mxu0 0.0
      %170 = vmatpush.msra.mxu0 0.0
      %171 = vmatpush.msra.mxu0 0.0
      %172 = vmatpush.msra.mxu0 0.0
      %173 = vmatpush.msra.mxu0 0.0
      %174 = vmatpush.msra.mxu0 %v154
      %175 = vmatpush.msra.mxu0 %v153
      %176 = vmatpush.msra.mxu0 %v152
      %177 = vmatpush.msra.mxu0 %v151
      %178 = vmatmul.f32.gmra.mxu0 %v160
      %v179 = vpop.f32.mrf.mxu0
      %v180 = vadd.f32 %v157, %v179
      %181 = vdwg.mxu0
      %182 = vmax.xlane.f32.xlu0 %v180
      %v183 = vpop.xlane.xlu0 %182
      %v184 = vsub.f32 %v180, %v183
      %v185 = vmul.f32 %v184, 1.442695
      %v186 = vpow.pop %v185
      %187 = vadd.xlane.f32.xlu0 %v186
      %v188 = vpop.xlane.xlu0 %187
      %v189 = vlog2.pop %v188
      %v190 = vmul.f32 %v189, 0.6931472
      %v191 = vsub.f32 %v184, %v190
      %192 = vst [vmem:[#allocation9] sm:$0xff] %v191
      %v193 = vmul.f32 %v191, 1.442695
      %v194 = vpow.pop %v193
      %195 = vst [vmem:[#allocation8] sm:$0xff] %v194
    $region29: #{tpu_custom_call.1} parent=1 // pred_fallthru
      _
    // Predicated region
    $region30: #{tpu_custom_call.1} parent=1 // pred_check
      _
    $region31: #{tpu_custom_call.1} parent=1 // pred_check_branch
      %197 = sbr.rel (0) target = $region33
    $region32: #{tpu_custom_call.1} parent=1 // pred_region
      %199 = vsyncadd [#allocation5], 0
      %s201 = sshll.u32 [#allocation8], 4
      %s202 = int_to_ptr.vmem [resolvable:$true] %s201
      %s203 = sshll.u32 %s3, 4
      %s204 = int_to_ptr.hbm [resolvable:$true] %s203
      %206 = dma.vmem_to_hbm [thread:$0]  %s202, 128, %s204, [#allocation5]
    $region33: #{tpu_custom_call.1} parent=1 // pred_fallthru
      _
    // Predicated region
    $region34: #{tpu_custom_call.1} parent=1 // pred_check
      _
    $region35: #{tpu_custom_call.1} parent=1 // pred_check_branch
      %208 = sbr.rel (0) target = $region37
    $region36: #{tpu_custom_call.1} parent=1 // pred_region
      %210 = vsyncadd [#allocation10], 0
      %s212 = sshll.u32 [#allocation9], 4
      %s213 = int_to_ptr.vmem [resolvable:$true] %s212
      %s214 = sshll.u32 %s4, 4
      %s215 = int_to_ptr.hbm [resolvable:$true] %s214
      %217 = dma.vmem_to_hbm [thread:$0]  %s213, 128, %s215, [#allocation10]
    $region37: #{tpu_custom_call.1} parent=1 // pred_fallthru
      _
    // Predicated region
    $region38: #{tpu_custom_call.1} parent=1 // pred_check
      _
    $region39: #{tpu_custom_call.1} parent=1 // pred_check_branch
      %219 = sbr.rel (0) target = $region41
    $region40: #{tpu_custom_call.1} parent=1 // pred_region
      %221 = dma.done [#allocation5], 128
    $region41: #{tpu_custom_call.1} parent=1 // pred_fallthru
      _
    // Predicated region
    $region42: #{tpu_custom_call.1} parent=1 // pred_check
      _
    $region43: #{tpu_custom_call.1} parent=1 // pred_check_branch
      %223 = sbr.rel (0) target = $region45
    $region44: #{tpu_custom_call.1} parent=1 // pred_region
      %225 = dma.done [#allocation10], 128
    $region45: #{tpu_custom_call.1} parent=1 // pred_fallthru
      _
    %226 = vsyncpa [#allocation4], 1
    %227 = vsyncpa [#allocation7], 1
    %228 = vsyncpa [#allocation5], 1
    %229 = vsyncpa [#allocation10], 1

</llo_original>
